<compile_context>
chip_gen: v5e
topology: v5e:2x2
jax: 0.10.0
libtpu: 0.0.40
codegen_flags: <defaults>
</compile_context>

<pallas_src>
import jax
import jax.numpy as jnp
from jax.experimental import pallas as pl
from jax.experimental.pallas import tpu as pltpu


def graphsage_kernel(feat_ref, h_ref, w_f_ref, w_h_ref, b_ref, o_ref):
    """One packed node-block: out = relu(feat @ W_f + h @ W_h + b).

    feat_ref : (BR, R*F_out)       packed initial node features
    h_ref    : (BR, R*F_h)         packed neighbor ('h') features
    w_f_ref  : (R*F_out, R*F_out)  block-diagonal of W_out^S
    w_h_ref  : (R*F_h,  R*F_out)   block-diagonal of W_h @ (I + ... + W_out^(S-1))
    b_ref    : (1, R*F_out)        tiled effective bias
    o_ref    : (BR, R*F_out)       packed output
    """
    acc = jnp.dot(feat_ref[...], w_f_ref[...], preferred_element_type=jnp.float32)
    acc = acc + jnp.dot(h_ref[...], w_h_ref[...],
                        preferred_element_type=jnp.float32)
    acc = acc + b_ref[...]
    o_ref[...] = jnp.maximum(acc, 0.0).astype(o_ref.dtype)


def _pick_replicas(f_out, f_h):
    """Node copies along the lane axis so packed width >= one full lane group."""
    try:
        kind = jax.devices()[0].device_kind.lower()
    except Exception:
        kind = ""
    lane_target = 256 if ("v6" in kind or "v7" in kind) else 128
    return max(1, lane_target // max(f_out, f_h, 1))


def graphsage_layer(feature, h, weight, bias, *, num_samples,
                    block_rows=1024, replicas=None):
    """feature: (N, F_out), h: (N, F_h), weight: (F_out+F_h, F_out) [y = x @ W + b],
    bias: (F_out,)."""
    orig_dtype = feature.dtype
    n, f_out = feature.shape
    f_h = h.shape[1]
    assert weight.shape == (f_out + f_h, f_out)

    w_out = weight[:f_out, :].astype(jnp.float32)   # multiplies the running `out`
    w_h = weight[f_out:, :].astype(jnp.float32)     # multiplies neighbor features
    b = bias.astype(jnp.float32)

    # ---- Fuse the num_samples chain algebraically (tiny wrapper-side matmuls). ----
    # out_S = feat @ W_out^S + (h @ W_h + b) @ sum_{j<S} W_out^j
    eye = jnp.eye(f_out, dtype=jnp.float32)
    w_pow = eye
    w_geo = jnp.zeros_like(eye)
    for _ in range(num_samples):
        w_geo = w_geo + w_pow
        w_pow = w_pow @ w_out
    w_feat_eff = w_pow                 # (F_out, F_out)  == W_out^S
    w_h_eff = w_h @ w_geo              # (F_h,  F_out)
    b_eff = b @ w_geo                  # (F_out,)

    # ---- Lane-dense packing: R node copies along the lane axis. ----
    r = _pick_replicas(f_out, f_h) if replicas is None else replicas

    n_pad = pl.cdiv(n, r) * r
    feat_f = feature.astype(jnp.float32)
    h_f = h.astype(jnp.float32)
    if n_pad != n:
        feat_f = jnp.pad(feat_f, ((0, n_pad - n), (0, 0)))
        h_f = jnp.pad(h_f, ((0, n_pad - n), (0, 0)))
    packed_n = n_pad // r

    feat_p = feat_f.reshape(packed_n, r * f_out)       # free row-major reshape
    h_p = h_f.reshape(packed_n, r * f_h)

    eye_r = jnp.eye(r, dtype=jnp.float32)
    w_feat_blk = jnp.kron(eye_r, w_feat_eff)           # (r*F_out, r*F_out)
    w_h_blk = jnp.kron(eye_r, w_h_eff)                 # (r*F_h,  r*F_out)
    b_blk = jnp.tile(b_eff, r).reshape(1, r * f_out)   # (1, r*F_out)

    # ---- Block the packed-node axis; pad so block shapes stay (8,128)-legal. ----
    br = min(block_rows, max(8, pl.cdiv(packed_n, 8) * 8))
    br = (br // 8) * 8
    packed_pad = pl.cdiv(packed_n, br) * br
    if packed_pad != packed_n:
        feat_p = jnp.pad(feat_p, ((0, packed_pad - packed_n), (0, 0)))
        h_p = jnp.pad(h_p, ((0, packed_pad - packed_n), (0, 0)))
    grid = (packed_pad // br,)

    out_p = pl.pallas_call(
        graphsage_kernel,
        out_shape=jax.ShapeDtypeStruct((packed_pad, r * f_out), orig_dtype),
        grid_spec=pltpu.PrefetchScalarGridSpec(
            num_scalar_prefetch=0,
            grid=grid,
            in_specs=[
                pl.BlockSpec((br, r * f_out), lambda i: (i, 0)),         # feature
                pl.BlockSpec((br, r * f_h), lambda i: (i, 0)),           # h
                pl.BlockSpec((r * f_out, r * f_out), lambda i: (0, 0)),  # W_feat
                pl.BlockSpec((r * f_h, r * f_out), lambda i: (0, 0)),    # W_h
                pl.BlockSpec((1, r * f_out), lambda i: (0, 0)),          # bias
            ],
            out_specs=pl.BlockSpec((br, r * f_out), lambda i: (i, 0)),
        ),
        compiler_params=pltpu.CompilerParams(
            dimension_semantics=("parallel",),
            vmem_limit_bytes=96 << 20),
    )(feat_p, h_p, w_feat_blk, w_h_blk, b_blk)

    out = out_p[:packed_n].reshape(n_pad, f_out)[:n]
    return out.astype(orig_dtype)


def graphsage_ref(feature, h, weight, bias, *, num_samples):
    """Pure-JAX reference: literal cat -> linear -> ... -> relu."""
    out = feature.astype(jnp.float32)
    for _ in range(num_samples):
        x_cat = jnp.concatenate([out, h.astype(jnp.float32)], axis=1)
        out = x_cat @ weight + bias
    return jnp.maximum(out, 0.0).astype(feature.dtype)


if __name__ == "__main__":
    # Shapes implied by the module: nn.Linear(in_features, out_features),
    # in_features = out_features + h_dim (so the loop is shape-consistent).
    num_nodes = 16
    out_features = 32          # == initial feature dim
    h_features = 32
    in_features = out_features + h_features
    num_samples = 3

    key = jax.random.PRNGKey(0)
    k_feat, k_h, k_w, k_b = jax.random.split(key, 4)

    feature = jax.random.normal(k_feat, (num_nodes, out_features), jnp.float32)
    h = jax.random.normal(k_h, (num_nodes, h_features), jnp.float32)

    # nn.Linear stores (out, in); we store the transpose (in, out): y = x @ W + b.
    bound = 1.0 / jnp.sqrt(in_features)
    weight = jax.random.uniform(k_w, (in_features, out_features),
                                jnp.float32, -bound, bound)
    bias = jax.random.uniform(k_b, (out_features,), jnp.float32, -bound, bound)

    out = graphsage_layer(feature, h, weight, bias, num_samples=num_samples)
    out = jax.block_until_ready(out)

    ref = graphsage_ref(feature, h, weight, bias, num_samples=num_samples)
    # Slightly looser tolerance: algebraic fusion reassociates the f32 matmul chain.
    assert jnp.allclose(out, ref, atol=1e-3, rtol=1e-3), "mismatch vs reference"

    print("KERNEL_OK")
</pallas_src>

<mosaic_0001>
module attributes {stable_mosaic.version = 11 : i64} {
  func.func @graphsage_kernel(%arg0: i32, %arg1: memref<8x128xf32, #tpu.memory_space<vmem>>, %arg2: memref<8x128xf32, #tpu.memory_space<vmem>>, %arg3: memref<128x128xf32, #tpu.memory_space<vmem>>, %arg4: memref<128x128xf32, #tpu.memory_space<vmem>>, %arg5: memref<1x128xf32, #tpu.memory_space<vmem>>, %arg6: memref<8x128xf32, #tpu.memory_space<vmem>>) attributes {dimension_semantics = [#tpu.dimension_semantics<parallel>], iteration_bounds = array<i64: 1>, scalar_prefetch = 0 : i64, scratch_operands = 0 : i64, tpu.core_type = #tpu.core_type<tc>, window_params = [{transform_indices = @transform_0, window_bounds = array<i64: 8, 128>}, {transform_indices = @transform_1, window_bounds = array<i64: 8, 128>}, {pipeline_mode = #tpu.pipeline_mode<synchronous>, transform_indices = @transform_2, window_bounds = array<i64: 128, 128>}, {pipeline_mode = #tpu.pipeline_mode<synchronous>, transform_indices = @transform_3, window_bounds = array<i64: 128, 128>}, {pipeline_mode = #tpu.pipeline_mode<synchronous>, transform_indices = @transform_4, window_bounds = array<i64: 1, 128>}, {transform_indices = @transform_5, window_bounds = array<i64: 8, 128>}]} {
    %c0 = arith.constant 0 : index
    %c0_0 = arith.constant 0 : index
    %0 = vector.load %arg1[%c0, %c0_0] : memref<8x128xf32, #tpu.memory_space<vmem>>, vector<8x128xf32>
    %c0_1 = arith.constant 0 : index
    %c0_2 = arith.constant 0 : index
    %1 = vector.load %arg3[%c0_1, %c0_2] : memref<128x128xf32, #tpu.memory_space<vmem>>, vector<128x128xf32>
    %cst = arith.constant dense<0.000000e+00> : vector<8x128xf32>
    %2 = tpu.matmul %0, %1, %cst {dimension_numbers = #tpu.dot_dimension_numbers<[1], [0], [0], [1], [0, 0, 1, 1], [], []>} : vector<8x128xf32>, vector<128x128xf32>, vector<8x128xf32> -> vector<8x128xf32>
    %c0_3 = arith.constant 0 : index
    %c0_4 = arith.constant 0 : index
    %3 = vector.load %arg2[%c0_3, %c0_4] : memref<8x128xf32, #tpu.memory_space<vmem>>, vector<8x128xf32>
    %c0_5 = arith.constant 0 : index
    %c0_6 = arith.constant 0 : index
    %4 = vector.load %arg4[%c0_5, %c0_6] : memref<128x128xf32, #tpu.memory_space<vmem>>, vector<128x128xf32>
    %cst_7 = arith.constant dense<0.000000e+00> : vector<8x128xf32>
    %5 = tpu.matmul %3, %4, %cst_7 {dimension_numbers = #tpu.dot_dimension_numbers<[1], [0], [0], [1], [0, 0, 1, 1], [], []>} : vector<8x128xf32>, vector<128x128xf32>, vector<8x128xf32> -> vector<8x128xf32>
    %6 = arith.addf %2, %5 : vector<8x128xf32>
    %c0_8 = arith.constant 0 : index
    %c0_9 = arith.constant 0 : index
    %7 = vector.load %arg5[%c0_8, %c0_9] : memref<1x128xf32, #tpu.memory_space<vmem>>, vector<1x128xf32>
    %8 = vector.broadcast %7 : vector<1x128xf32> to vector<8x128xf32>
    %9 = arith.addf %6, %8 : vector<8x128xf32>
    %cst_10 = arith.constant 0.000000e+00 : f32
    %10 = vector.broadcast %cst_10 : f32 to vector<8x128xf32>
    %11 = arith.maximumf %9, %10 : vector<8x128xf32>
    %c0_11 = arith.constant 0 : index
    %c0_12 = arith.constant 0 : index
    %12 = vector.load %arg6[%c0_11, %c0_12] : memref<8x128xf32, #tpu.memory_space<vmem>>, vector<8x128xf32>
    tpu.vector_store %arg6[%c0_11, %c0_12], %11 {strides = array<i32>} : memref<8x128xf32, #tpu.memory_space<vmem>>, vector<8x128xf32>,
    return
  }
  func.func @transform_0(%arg0: i32) -> (i32, i32) {
    %c0_i32 = arith.constant 0 : i32
    %c0_i32_0 = arith.constant 0 : i32
    return %arg0, %c0_i32 : i32, i32
  }
  func.func @transform_1(%arg0: i32) -> (i32, i32) {
    %c0_i32 = arith.constant 0 : i32
    %c0_i32_0 = arith.constant 0 : i32
    return %arg0, %c0_i32 : i32, i32
  }
  func.func @transform_2(%arg0: i32) -> (i32, i32) {
    %c0_i32 = arith.constant 0 : i32
    %c0_i32_0 = arith.constant 0 : i32
    %c0_i32_1 = arith.constant 0 : i32
    return %c0_i32, %c0_i32_0 : i32, i32
  }
  func.func @transform_3(%arg0: i32) -> (i32, i32) {
    %c0_i32 = arith.constant 0 : i32
    %c0_i32_0 = arith.constant 0 : i32
    %c0_i32_1 = arith.constant 0 : i32
    return %c0_i32, %c0_i32_0 : i32, i32
  }
  func.func @transform_4(%arg0: i32) -> (i32, i32) {
    %c0_i32 = arith.constant 0 : i32
    %c0_i32_0 = arith.constant 0 : i32
    %c0_i32_1 = arith.constant 0 : i32
    return %c0_i32, %c0_i32_0 : i32, i32
  }
  func.func @transform_5(%arg0: i32) -> (i32, i32) {
    %c0_i32 = arith.constant 0 : i32
    %c0_i32_0 = arith.constant 0 : i32
    return %arg0, %c0_i32 : i32, i32
  }
}

</mosaic_0001>

<llo_original>
// kernel: tpu_custom_call.1
$region0: #{tpu_custom_call.1}
  #allocation0 [shape = 'u32[]', space=smem, size = 0x4, offset = 0x4, fixed_abs, tag = 'smem constant byte address 0x4 - core index']
  #allocation1 [shape = 'u32[72,128]{1,0:T(1,128)}', space=vmem, size = 0x9000, scoped, tag = 'internal scratch']
  %s0 = inlined_call_operand.hbm [shape: f32[8,128], index: 0, kind: input, shape index: {}]
  %s1 = inlined_call_operand.hbm [shape: f32[8,128], index: 1, kind: input, shape index: {}]
  %s2 = inlined_call_operand.hbm [shape: f32[128,128], index: 2, kind: input, shape index: {}]
  %s3 = inlined_call_operand.hbm [shape: f32[128,128], index: 3, kind: input, shape index: {}]
  %s4 = inlined_call_operand.vmem [shape: f32[1,128], index: 4, kind: input, shape index: {}]
  %s5 = inlined_call_operand.hbm [shape: f32[8,128], index: 5, kind: output, shape index: {}]
  %s6 = sld [smem:[#allocation0]]
  $region46: #{tpu_custom_call.1} parent=0
    _
  %s8 = ssub.s32 1, %s6
  %s9 = scalar_select 0, %s8, %s6
  $region1: #{tpu_custom_call.1} parent=0
    #allocation2 [shape = 'u8[4096]{0}', space=vmem, size = 0x1000, scoped, tag = 'input window, operand 0, single buffered']
    #allocation3 [shape = 's32[1]{0}', space=sflag, size = 0x4, scoped, tag = 'scoped memory for tpu_custom_call.1']
    #allocation4 [shape = 's32[1]{0}', space=sflag, size = 0x4, scoped, tag = 'scoped memory for tpu_custom_call.1']
    #allocation5 [shape = 'u8[4096]{0}', space=vmem, size = 0x1000, scoped, tag = 'input window, operand 1, single buffered']
    #allocation6 [shape = 's32[1]{0}', space=sflag, size = 0x4, scoped, tag = 'scoped memory for tpu_custom_call.1']
    #allocation7 [shape = 'u8[65536]{0}', space=vmem, size = 0x10000, scoped, tag = 'input window, operand 2, single buffered']
    #allocation8 [shape = 'u8[65536]{0}', space=vmem, size = 0x10000, scoped, tag = 'input window, operand 3, single buffered']
    #allocation9 [shape = 's32[1]{0}', space=sflag, size = 0x4, scoped, tag = 'scoped memory for tpu_custom_call.1']
    #allocation10 [shape = 'u8[4096]{0}', space=vmem, size = 0x1000, scoped, tag = 'output window, operand 0, single buffered']
    %10 = vsyncpa [#allocation3], 0
    %11 = vsyncpa [#allocation6], 0
    %12 = vsyncpa [#allocation9], 0
    %13 = vsyncpa [#allocation4], 0
    // Predicated region
    $region2: #{tpu_custom_call.1} parent=1 // pred_check
      _
    $region3: #{tpu_custom_call.1} parent=1 // pred_check_branch
      %15 = sbr.rel (0) target = $region5
    $region4: #{tpu_custom_call.1} parent=1 // pred_region
      %17 = vsyncadd [#allocation3], 0
      %s19 = sshll.u32 %s0, 4
      %s20 = int_to_ptr.hbm [resolvable:$true] %s19
      %s21 = sshll.u32 [#allocation2], 4
      %s22 = int_to_ptr.vmem [resolvable:$true] %s21
      %24 = dma.hbm_to_vmem [thread:$0]  %s20, 128, %s22, [#allocation3]
    $region5: #{tpu_custom_call.1} parent=1 // pred_fallthru
      _
    // Predicated region
    $region6: #{tpu_custom_call.1} parent=1 // pred_check
      _
    $region7: #{tpu_custom_call.1} parent=1 // pred_check_branch
      %26 = sbr.rel (0) target = $region9
    $region8: #{tpu_custom_call.1} parent=1 // pred_region
      %28 = vsyncadd [#allocation6], 0
      %s30 = sshll.u32 %s1, 4
      %s31 = int_to_ptr.hbm [resolvable:$true] %s30
      %s32 = sshll.u32 [#allocation5], 4
      %s33 = int_to_ptr.vmem [resolvable:$true] %s32
      %35 = dma.hbm_to_vmem [thread:$0]  %s31, 128, %s33, [#allocation6]
    $region9: #{tpu_custom_call.1} parent=1 // pred_fallthru
      _
    // Predicated region
    $region10: #{tpu_custom_call.1} parent=1 // pred_check
      _
    $region11: #{tpu_custom_call.1} parent=1 // pred_check_branch
      %37 = sbr.rel (0) target = $region13
    $region12: #{tpu_custom_call.1} parent=1 // pred_region
      %39 = vsyncadd [#allocation6], 0
      %s40 = sshll.u32 %s2, 4
      %s41 = int_to_ptr.hbm [resolvable:$true] %s40
      %s42 = sshll.u32 [#allocation7], 4
      %s43 = int_to_ptr.vmem [resolvable:$true] %s42
      %48 = dma.hbm_to_vmem [thread:$0]  %s41, 2048, %s43, [#allocation6], 128, 128, 8
    $region13: #{tpu_custom_call.1} parent=1 // pred_fallthru
      _
    // Predicated region
    $region14: #{tpu_custom_call.1} parent=1 // pred_check
      _
    $region15: #{tpu_custom_call.1} parent=1 // pred_check_branch
      %50 = sbr.rel (0) target = $region17
    $region16: #{tpu_custom_call.1} parent=1 // pred_region
      %52 = vsyncadd [#allocation9], 0
      %s53 = sshll.u32 %s3, 4
      %s54 = int_to_ptr.hbm [resolvable:$true] %s53
      %s55 = sshll.u32 [#allocation8], 4
      %s56 = int_to_ptr.vmem [resolvable:$true] %s55
      %61 = dma.hbm_to_vmem [thread:$0]  %s54, 2048, %s56, [#allocation9], 128, 128, 8
    $region17: #{tpu_custom_call.1} parent=1 // pred_fallthru
      _
    // Predicated region
    $region18: #{tpu_custom_call.1} parent=1 // pred_check
      _
    $region19: #{tpu_custom_call.1} parent=1 // pred_check_branch
      %63 = sbr.rel (0) target = $region21
    $region20: #{tpu_custom_call.1} parent=1 // pred_region
      _
    $region21: #{tpu_custom_call.1} parent=1 // pred_fallthru
      _
    // Predicated region
    $region22: #{tpu_custom_call.1} parent=1 // pred_check
      _
    $region23: #{tpu_custom_call.1} parent=1 // pred_check_branch
      %65 = sbr.rel (0) target = $region25
    $region24: #{tpu_custom_call.1} parent=1 // pred_region
      %67 = dma.done [#allocation3], 128
    $region25: #{tpu_custom_call.1} parent=1 // pred_fallthru
      _
    // Predicated region
    $region26: #{tpu_custom_call.1} parent=1 // pred_check
      _
    $region27: #{tpu_custom_call.1} parent=1 // pred_check_branch
      %69 = sbr.rel (0) target = $region29
    $region28: #{tpu_custom_call.1} parent=1 // pred_region
      %71 = dma.done [#allocation6], 128
    $region29: #{tpu_custom_call.1} parent=1 // pred_fallthru
      _
    // Predicated region
    $region30: #{tpu_custom_call.1} parent=1 // pred_check
      _
    $region31: #{tpu_custom_call.1} parent=1 // pred_check_branch
      %73 = sbr.rel (0) target = $region33
    $region32: #{tpu_custom_call.1} parent=1 // pred_region
      %75 = dma.done [#allocation6], 2048
    $region33: #{tpu_custom_call.1} parent=1 // pred_fallthru
      _
    // Predicated region
    $region34: #{tpu_custom_call.1} parent=1 // pred_check
      _
    $region35: #{tpu_custom_call.1} parent=1 // pred_check_branch
      %77 = sbr.rel (0) target = $region37
    $region36: #{tpu_custom_call.1} parent=1 // pred_region
      %79 = dma.done [#allocation9], 2048
    $region37: #{tpu_custom_call.1} parent=1 // pred_fallthru
      _
    %v80 = vld [vmem:[#allocation2] sm:$0xff]
    %v81 = vld [vmem:[#allocation7] sm:$0xff]
    %v82 = vld [vmem:[#allocation7 + $0x8] sm:$0xff]
    %v83 = vld [vmem:[#allocation7 + $0x10] sm:$0xff]
    %v84 = vld [vmem:[#allocation7 + $0x18] sm:$0xff]
    %v85 = vld [vmem:[#allocation7 + $0x20] sm:$0xff]
    %v86 = vld [vmem:[#allocation7 + $0x28] sm:$0xff]
    %v87 = vld [vmem:[#allocation7 + $0x30] sm:$0xff]
    %v88 = vld [vmem:[#allocation7 + $0x38] sm:$0xff]
    %v89 = vld [vmem:[#allocation7 + $0x40] sm:$0xff]
    %v90 = vld [vmem:[#allocation7 + $0x48] sm:$0xff]
    %v91 = vld [vmem:[#allocation7 + $0x50] sm:$0xff]
    %v92 = vld [vmem:[#allocation7 + $0x58] sm:$0xff]
    %v93 = vld [vmem:[#allocation7 + $0x60] sm:$0xff]
    %v94 = vld [vmem:[#allocation7 + $0x68] sm:$0xff]
    %v95 = vld [vmem:[#allocation7 + $0x70] sm:$0xff]
    %v96 = vld [vmem:[#allocation7 + $0x78] sm:$0xff]
    %v97 = vld [vmem:[#allocation5] sm:$0xff]
    %v98 = vld [vmem:[#allocation8] sm:$0xff]
    %v99 = vld [vmem:[#allocation8 + $0x8] sm:$0xff]
    %v100 = vld [vmem:[#allocation8 + $0x10] sm:$0xff]
    %v101 = vld [vmem:[#allocation8 + $0x18] sm:$0xff]
    %v102 = vld [vmem:[#allocation8 + $0x20] sm:$0xff]
    %v103 = vld [vmem:[#allocation8 + $0x28] sm:$0xff]
    %v104 = vld [vmem:[#allocation8 + $0x30] sm:$0xff]
    %v105 = vld [vmem:[#allocation8 + $0x38] sm:$0xff]
    %v106 = vld [vmem:[#allocation8 + $0x40] sm:$0xff]
    %v107 = vld [vmem:[#allocation8 + $0x48] sm:$0xff]
    %v108 = vld [vmem:[#allocation8 + $0x50] sm:$0xff]
    %v109 = vld [vmem:[#allocation8 + $0x58] sm:$0xff]
    %v110 = vld [vmem:[#allocation8 + $0x60] sm:$0xff]
    %v111 = vld [vmem:[#allocation8 + $0x68] sm:$0xff]
    %v112 = vld [vmem:[#allocation8 + $0x70] sm:$0xff]
    %v113 = vld [vmem:[#allocation8 + $0x78] sm:$0xff]
    %114 = vmatpush.msra.mxu0 %v113
    %115 = vmatpush.msra.mxu0 %v112
    %116 = vmatpush.msra.mxu0 %v111
    %117 = vmatpush.msra.mxu0 %v110
    %118 = vmatpush.msra.mxu0 %v109
    %119 = vmatpush.msra.mxu0 %v108
    %120 = vmatpush.msra.mxu0 %v107
    %121 = vmatpush.msra.mxu0 %v106
    %122 = vmatpush.msra.mxu0 %v105
    %123 = vmatpush.msra.mxu0 %v104
    %124 = vmatpush.msra.mxu0 %v103
    %125 = vmatpush.msra.mxu0 %v102
    %126 = vmatpush.msra.mxu0 %v101
    %127 = vmatpush.msra.mxu0 %v100
    %128 = vmatpush.msra.mxu0 %v99
    %129 = vmatpush.msra.mxu0 %v98
    %130 = vmatmul.f32.gmra.mxu0 %v97
    %v131 = vpop.f32.mrf.mxu0
    %v132 = vadd.f32 0.0, %v131
    %133 = vdwg.mxu0
    %134 = vmatpush.msra.mxu0 %v96
    %135 = vmatpush.msra.mxu0 %v95
    %136 = vmatpush.msra.mxu0 %v94
    %137 = vmatpush.msra.mxu0 %v93
    %138 = vmatpush.msra.mxu0 %v92
    %139 = vmatpush.msra.mxu0 %v91
    %140 = vmatpush.msra.mxu0 %v90
    %141 = vmatpush.msra.mxu0 %v89
    %142 = vmatpush.msra.mxu0 %v88
    %143 = vmatpush.msra.mxu0 %v87
    %144 = vmatpush.msra.mxu0 %v86
    %145 = vmatpush.msra.mxu0 %v85
    %146 = vmatpush.msra.mxu0 %v84
    %147 = vmatpush.msra.mxu0 %v83
    %148 = vmatpush.msra.mxu0 %v82
    %149 = vmatpush.msra.mxu0 %v81
    %150 = vmatmul.f32.gmra.mxu0 %v80
    %v151 = vpop.f32.mrf.mxu0
    %v152 = vadd.f32 %v132, %v151
    %153 = vdwg.mxu0
    %v154 = vld [vmem:[%s4] sm:$0x1]
    %v156 = vperm.slane %v154, 0
    %v158 = vadd.f32 %v152, %v156
    %v159 = vmax.f32 %v158, 0.0
    %160 = vst [vmem:[#allocation10] sm:$0xff] %v159
    // Predicated region
    $region38: #{tpu_custom_call.1} parent=1 // pred_check
      _
    $region39: #{tpu_custom_call.1} parent=1 // pred_check_branch
      %162 = sbr.rel (0) target = $region41
    $region40: #{tpu_custom_call.1} parent=1 // pred_region
      %164 = vsyncadd [#allocation4], 0
      %s166 = sshll.u32 [#allocation10], 4
      %s167 = int_to_ptr.vmem [resolvable:$true] %s166
      %s168 = sshll.u32 %s5, 4
      %s169 = int_to_ptr.hbm [resolvable:$true] %s168
      %171 = dma.vmem_to_hbm [thread:$0]  %s167, 128, %s169, [#allocation4]
    $region41: #{tpu_custom_call.1} parent=1 // pred_fallthru
      _
    // Predicated region
    $region42: #{tpu_custom_call.1} parent=1 // pred_check
      _
    $region43: #{tpu_custom_call.1} parent=1 // pred_check_branch
      %173 = sbr.rel (0) target = $region45
    $region44: #{tpu_custom_call.1} parent=1 // pred_region
      %175 = dma.done [#allocation4], 128
    $region45: #{tpu_custom_call.1} parent=1 // pred_fallthru
      _
    %176 = vsyncpa [#allocation3], 1
    %177 = vsyncpa [#allocation6], 1
    %178 = vsyncpa [#allocation9], 1
    %179 = vsyncpa [#allocation4], 1

</llo_original>
